<compile_context>
chip_gen: v7x
topology: tpu7x:2x2x1
jax: 0.10.0
libtpu: 0.0.40
codegen_flags: <defaults>
</compile_context>

<pallas_src>
import functools

import jax
import jax.numpy as jnp
from jax import lax
from jax.experimental import pallas as pl
from jax.experimental.pallas import tpu as pltpu


# ---------------------------------------------------------------------------
# Best-effort chip introspection (safe fallbacks everywhere).
# ---------------------------------------------------------------------------
def _chip_info():
    """Returns (vmem_bytes_per_core, has_two_tensorcores)."""
    vmem = None
    try:
        info = pltpu.get_tpu_info()
        cap = getattr(info, "vmem_capacity_bytes", None)
        if cap:
            vmem = int(cap)
    except Exception:
        pass
    kind = ""
    try:
        kind = str(jax.devices()[0].device_kind).lower()
    except Exception:
        pass
    two_tc = ("v7" in kind) or ("7x" in kind)
    if vmem is None:
        vmem = 128 * 1024 * 1024 if (("v5" in kind) or ("v6" in kind)) \
            else 64 * 1024 * 1024
    if two_tc:
        # v7x: 64 MiB per TensorCore regardless of what the query reports.
        vmem = min(vmem, 64 * 1024 * 1024)
    return vmem, two_tc


# ---------------------------------------------------------------------------
# Kernel 1: per-row squared-error partial sums (lane-dense accumulator)
# ---------------------------------------------------------------------------
def _err_kernel(x_ref, t_ref, out_ref, acc_ref, *, valid_rem, row_strip):
    # grid = (row_blocks, d_blocks); axis 1 is the reduction ("arbitrary") axis.
    j = pl.program_id(1)
    nj = pl.num_programs(1)
    tn, td = x_ref.shape

    @pl.when(j == 0)
    def _():
        acc_ref[...] = jnp.zeros_like(acc_ref)

    def accum(n_full_chunks, part_cols):
        # Accumulate `n_full_chunks` full 128-lane chunks plus an optional
        # partial chunk with `part_cols` valid lanes.  Rows are processed in
        # static sub-strips to bound vreg live ranges for long unrolls.
        for r0 in range(0, tn, row_strip):
            rs = min(row_strip, tn - r0)
            acc = jnp.zeros((rs, 128), jnp.float32)
            for g in range(n_full_chunks):
                lo = g * 128
                d = (x_ref[r0:r0 + rs, lo:lo + 128].astype(jnp.float32)
                     - t_ref[r0:r0 + rs, lo:lo + 128].astype(jnp.float32))
                acc = acc + d * d
            if part_cols:
                lo = n_full_chunks * 128
                d = (x_ref[r0:r0 + rs, lo:lo + 128].astype(jnp.float32)
                     - t_ref[r0:r0 + rs, lo:lo + 128].astype(jnp.float32))
                lane = lax.broadcasted_iota(jnp.int32, (rs, 128), 1)
                d = jnp.where(lane < part_cols, d, jnp.float32(0.0))
                acc = acc + d * d
            acc_ref[r0:r0 + rs, :] += acc

    if valid_rem == td:
        # Every D block is fully valid: single unmasked fast path.
        accum(td // 128, 0)
    else:
        # Interior blocks: unmasked fast path.
        @pl.when(j < nj - 1)
        def _():
            accum(td // 128, 0)

        # Tail block: only the (statically known) partial chunk is masked;
        # fully out-of-range chunks are skipped entirely.
        @pl.when(j == nj - 1)
        def _():
            accum(valid_rem // 128, valid_rem % 128)

    @pl.when(j == nj - 1)
    def _():
        out_ref[...] = acc_ref[...]


def _per_sample_sq_err(x2d, t2d):
    """x2d, t2d: (rows, dcols). Returns (rows, 128) f32 lane partial sums."""
    rows, dcols = x2d.shape
    itemsize = jnp.dtype(x2d.dtype).itemsize
    vmem_cap, two_tc = _chip_info()
    big_vmem = vmem_cap >= 100 * 1024 * 1024

    # Row tiling.  On 2-TC chips split small batches so the "parallel" axis
    # has >= 2 steps and both TensorCores stream HBM.
    if rows <= 128:
        tile_n = rows
        if two_tc and rows >= 16:
            tile_n = ((rows + 15) // 16) * 8       # multiple of 8, 2 blocks
    else:
        tile_n = 128
    # NOTE: when rows % tile_n != 0 the tail row block reads (and squares)
    # out-of-bounds rows; Pallas clips the output write-back to valid rows
    # and no cross-row op exists, so garbage never reaches valid output.

    # D tiling: biggest double-buffered input footprint that fits comfortably
    # (2 inputs x 2 pipeline buffers), generation-aware.
    budget = int(vmem_cap * 0.55)
    tile_d = budget // (4 * max(tile_n, 8) * itemsize)
    d_cap = 16384 if big_vmem else 8192
    tile_d = max(512, min(tile_d, d_cap))
    tile_d = (tile_d // 128) * 128
    d_ceil = ((dcols + 127) // 128) * 128
    tile_d = min(tile_d, max(128, d_ceil))

    grid = (pl.cdiv(rows, tile_n), pl.cdiv(dcols, tile_d))
    nj = grid[1]
    valid_rem = dcols - (nj - 1) * tile_d          # valid cols in last D block
    n_chunks = tile_d // 128
    row_strip = tile_n if (tile_n <= 64 or n_chunks <= 64) else 64
    vmem_limit = (96 if big_vmem else 48) * 1024 * 1024

    kernel = functools.partial(_err_kernel, valid_rem=valid_rem,
                               row_strip=row_strip)

    # TODO(synk): sweep pipeline_mode=pl.Buffered(3) on the two input
    # BlockSpecs for v7x (footprint-check against its 64 MiB VMEM first).
    return pl.pallas_call(
        kernel,
        out_shape=jax.ShapeDtypeStruct((rows, 128), jnp.float32),
        grid_spec=pltpu.PrefetchScalarGridSpec(
            num_scalar_prefetch=0,
            grid=grid,
            in_specs=[
                pl.BlockSpec((tile_n, tile_d), lambda i, j: (i, j)),
                pl.BlockSpec((tile_n, tile_d), lambda i, j: (i, j)),
            ],
            out_specs=pl.BlockSpec((tile_n, 128), lambda i, j: (i, 0)),
            scratch_shapes=[pltpu.VMEM((tile_n, 128), jnp.float32)],
        ),
        compiler_params=pltpu.CompilerParams(
            dimension_semantics=("parallel", "arbitrary"),
            vmem_limit_bytes=vmem_limit),
    )(x2d, t2d)


# ---------------------------------------------------------------------------
# Kernel 2: vectorized split scan over sorted, mean-centered per-sample errors
# ---------------------------------------------------------------------------
def _drae_split_kernel(params_ref, es_ref, out_ref, *, n):
    rblk = es_ref.shape[0]
    nf = jnp.float32(n)
    lamb = params_ref[0]
    mean_err = params_ref[1]
    total_c = params_ref[2]         # sum of centered errors (~0)
    total_scatter = params_ref[3]   # sum of squared centered errors

    x = es_ref[...]                 # (R, 128) f32, zero-padded past n

    # Inclusive prefix sums over the flattened (row-major) sorted order via
    # three small MXU matmuls (no cross-lane shuffles, no reshapes):
    #   lane_pre[r,c]  = sum_{c' <= c} x[r,c']
    #   row_bcast[r,c] = sum_{c'}      x[r,c']     (row total on every lane)
    #   row_off[r,c]   = sum_{r' < r}  row_total[r']
    ci = lax.broadcasted_iota(jnp.int32, (128, 128), 0)
    cj = lax.broadcasted_iota(jnp.int32, (128, 128), 1)
    tri = (ci <= cj).astype(jnp.float32)               # upper-triangular ones
    ones = jnp.ones((128, 128), jnp.float32)
    ri = lax.broadcasted_iota(jnp.int32, (rblk, rblk), 0)
    rj = lax.broadcasted_iota(jnp.int32, (rblk, rblk), 1)
    low = (rj < ri).astype(jnp.float32)                # strictly-lower ones

    lane_pre = jnp.dot(x, tri, preferred_element_type=jnp.float32)
    row_bcast = jnp.dot(x, ones, preferred_element_type=jnp.float32)
    row_off = jnp.dot(low, row_bcast, preferred_element_type=jnp.float32)
    prefix = lane_pre + row_off                        # (R, 128)

    flat = (lax.broadcasted_iota(jnp.int32, (rblk, 128), 0) * 128
            + lax.broadcasted_iota(jnp.int32, (rblk, 128), 1))
    valid = flat < (n - 1)                             # split sizes k = 1..n-1
    k = (flat + 1).astype(jnp.float32)

    mean_in = prefix / k
    mean_out = (total_c - prefix) / (nf - k)
    within = (total_scatter
              - k * mean_in * mean_in
              - (nf - k) * mean_out * mean_out)
    h = within / total_scatter

    inf = jnp.float32(jnp.inf)
    # NaN (e.g. total_scatter == 0) and invalid positions never win, exactly
    # like the strict `h < regul` test in the PyTorch loop.
    h_ok = jnp.where(jnp.logical_and(valid, h == h), h, inf)
    h_min = jnp.min(h_ok)                              # == final `regul`

    # First index achieving the minimum (strict '<' update semantics).
    is_min = jnp.logical_and(h_ok == h_min, valid)
    idx = jnp.where(is_min, flat, jnp.int32(2147483647))
    first = jnp.min(idx)
    obj_c = jnp.sum(jnp.where(flat == first, mean_in, jnp.float32(0.0)))

    found = h_min < jnp.float32(1e10)
    result = jnp.where(found, (obj_c + mean_err) + lamb * h_min, mean_err)
    out_ref[...] = jnp.zeros_like(out_ref) + result


def _drae_from_err(err, lamb):
    err = err.astype(jnp.float32)
    n = err.shape[0]
    mean_err = jnp.mean(err)
    # TODO(synk): torch.sort has no clean Pallas/Mosaic equivalent; the
    # length-N error vector is sorted with jnp.sort inside the jitted wrapper.
    es_c = jnp.sort(err) - mean_err                    # centered & sorted
    total_c = jnp.sum(es_c)
    total_scatter = jnp.sum(es_c * es_c)

    rblk = max(8, 8 * ((pl.cdiv(n, 128) + 7) // 8))    # rows of the VMEM block
    pad = rblk * 128 - n
    es2d = jnp.pad(es_c, (0, pad)).reshape(rblk, 128)

    params = jnp.stack([jnp.asarray(lamb, jnp.float32),
                        mean_err, total_c, total_scatter])

    out = pl.pallas_call(
        functools.partial(_drae_split_kernel, n=n),
        out_shape=jax.ShapeDtypeStruct((8, 128), jnp.float32),
        in_specs=[pl.BlockSpec(memory_space=pltpu.SMEM),
                  pl.BlockSpec(memory_space=pltpu.VMEM)],
        out_specs=pl.BlockSpec(memory_space=pltpu.VMEM),
    )(params, es2d)
    return out[0, 0]


# ---------------------------------------------------------------------------
# Wrapper (== DRAELossAutograd.forward), compiled as one program
# ---------------------------------------------------------------------------
@functools.partial(jax.jit, static_argnames=("size_average",))
def drae_loss(inputs, targets, lamb, size_average=True):
    # `size_average` is unused in the reference forward pass as well.
    n = inputs.shape[0]
    x2d = inputs.reshape(n, -1)
    t2d = targets.reshape(n, -1)
    d = x2d.shape[1]

    # Fill vreg sublanes for tiny batches: fold each sample's feature dim into
    # several rows (the squared-error sum is order-independent).
    fold = 1
    if n < 8:
        while n * fold < 8 and d % (fold * 2) == 0:
            fold *= 2
    rows, dcols = n * fold, d // fold
    x2d = x2d.reshape(rows, dcols)
    t2d = t2d.reshape(rows, dcols)

    partial_sums = _per_sample_sq_err(x2d, t2d)        # (rows, 128) f32
    err = partial_sums.reshape(n, fold * 128).sum(axis=1)
    return _drae_from_err(err, lamb)


# ---------------------------------------------------------------------------
# Pure-JAX/Python reference mirroring the PyTorch code (for self-check)
# ---------------------------------------------------------------------------
def _reference(inputs, targets, lamb):
    n = inputs.shape[0]
    err = jnp.sum((inputs - targets) ** 2, axis=tuple(range(1, inputs.ndim)))
    err_sorted = jnp.sort(err)
    total_scatter = jnp.sum((err - jnp.mean(err)) ** 2)
    regul = 1e10
    obj = None
    for i in range(n - 1):
        e_in = err_sorted[: i + 1]
        e_out = err_sorted[i + 1:]
        within = (jnp.sum((e_in - jnp.mean(e_in)) ** 2)
                  + jnp.sum((e_out - jnp.mean(e_out)) ** 2))
        h = float(within / total_scatter)
        if h < regul:
            regul = h
            obj = float(jnp.mean(e_in))
    if obj is None:
        return float(jnp.mean(err))
    return obj + lamb * regul


if __name__ == "__main__":
    key = jax.random.PRNGKey(0)
    k1, k2 = jax.random.split(key)
    inputs = jax.random.normal(k1, (4, 4, 16, 16), dtype=jnp.float32)
    targets = jax.random.normal(k2, (4, 4, 16, 16), dtype=jnp.float32)
    lamb = 0.5

    out = drae_loss(inputs, targets, lamb)
    out = jax.block_until_ready(out)

    ref = _reference(inputs, targets, lamb)
    assert abs(float(out) - ref) <= 1e-3 * max(1.0, abs(ref)), (float(out), ref)
    print("KERNEL_OK")
</pallas_src>

<mosaic_0001>
module attributes {stable_mosaic.version = 11 : i64} {
  func.func @_err_kernel(%arg0: i32, %arg1: i32, %arg2: memref<8x512xf32, #tpu.memory_space<vmem>>, %arg3: memref<8x512xf32, #tpu.memory_space<vmem>>, %arg4: memref<8x128xf32, #tpu.memory_space<vmem>>, %arg5: memref<8x128xf32, #tpu.memory_space<vmem>>) attributes {dimension_semantics = [#tpu.dimension_semantics<parallel>, #tpu.dimension_semantics<arbitrary>], iteration_bounds = array<i64: 1, 1>, scalar_prefetch = 0 : i64, scratch_operands = 1 : i64, tpu.core_type = #tpu.core_type<tc>, window_params = [{transform_indices = @transform_0, window_bounds = array<i64: 8, 512>}, {transform_indices = @transform_1, window_bounds = array<i64: 8, 512>}, {transform_indices = @transform_2, window_bounds = array<i64: 8, 128>}]} {
    %c0_i32 = arith.constant 0 : i32
    %0 = arith.cmpi eq, %arg1, %c0_i32 : i32
    %1 = arith.extui %0 : i1 to i32
    %c0_i32_0 = arith.constant 0 : i32
    %2 = arith.cmpi ne, %1, %c0_i32_0 : i32
    scf.if %2 {
      %cst_19 = arith.constant 0.000000e+00 : f32
      %30 = vector.broadcast %cst_19 : f32 to vector<8x128xf32>
      %c0_20 = arith.constant 0 : index
      %c0_21 = arith.constant 0 : index
      %31 = vector.load %arg5[%c0_20, %c0_21] : memref<8x128xf32, #tpu.memory_space<vmem>>, vector<8x128xf32>
      tpu.vector_store %arg5[%c0_20, %c0_21], %30 {strides = array<i32>} : memref<8x128xf32, #tpu.memory_space<vmem>>, vector<8x128xf32>,
    } else {
    }
    %cst = arith.constant 0.000000e+00 : f32
    %3 = vector.broadcast %cst : f32 to vector<8x128xf32>
    %c0 = arith.constant 0 : index
    %c0_1 = arith.constant 0 : index
    %4 = vector.load %arg2[%c0, %c0_1] : memref<8x512xf32, #tpu.memory_space<vmem>>, vector<8x128xf32>
    %c0_2 = arith.constant 0 : index
    %c0_3 = arith.constant 0 : index
    %5 = vector.load %arg3[%c0_2, %c0_3] : memref<8x512xf32, #tpu.memory_space<vmem>>, vector<8x128xf32>
    %6 = arith.subf %4, %5 : vector<8x128xf32>
    %7 = arith.mulf %6, %6 : vector<8x128xf32>
    %8 = arith.addf %3, %7 : vector<8x128xf32>
    %c0_4 = arith.constant 0 : index
    %c128 = arith.constant 128 : index
    %9 = vector.load %arg2[%c0_4, %c128] : memref<8x512xf32, #tpu.memory_space<vmem>>, vector<8x128xf32>
    %c0_5 = arith.constant 0 : index
    %c128_6 = arith.constant 128 : index
    %10 = vector.load %arg3[%c0_5, %c128_6] : memref<8x512xf32, #tpu.memory_space<vmem>>, vector<8x128xf32>
    %11 = arith.subf %9, %10 : vector<8x128xf32>
    %12 = arith.mulf %11, %11 : vector<8x128xf32>
    %13 = arith.addf %8, %12 : vector<8x128xf32>
    %c0_7 = arith.constant 0 : index
    %c256 = arith.constant 256 : index
    %14 = vector.load %arg2[%c0_7, %c256] : memref<8x512xf32, #tpu.memory_space<vmem>>, vector<8x128xf32>
    %c0_8 = arith.constant 0 : index
    %c256_9 = arith.constant 256 : index
    %15 = vector.load %arg3[%c0_8, %c256_9] : memref<8x512xf32, #tpu.memory_space<vmem>>, vector<8x128xf32>
    %16 = arith.subf %14, %15 : vector<8x128xf32>
    %17 = arith.mulf %16, %16 : vector<8x128xf32>
    %18 = arith.addf %13, %17 : vector<8x128xf32>
    %c0_10 = arith.constant 0 : index
    %c384 = arith.constant 384 : index
    %19 = vector.load %arg2[%c0_10, %c384] : memref<8x512xf32, #tpu.memory_space<vmem>>, vector<8x128xf32>
    %c0_11 = arith.constant 0 : index
    %c384_12 = arith.constant 384 : index
    %20 = vector.load %arg3[%c0_11, %c384_12] : memref<8x512xf32, #tpu.memory_space<vmem>>, vector<8x128xf32>
    %21 = arith.subf %19, %20 : vector<8x128xf32>
    %22 = arith.mulf %21, %21 : vector<8x128xf32>
    %23 = arith.addf %18, %22 : vector<8x128xf32>
    %c0_13 = arith.constant 0 : index
    %c0_14 = arith.constant 0 : index
    %24 = vector.load %arg5[%c0_13, %c0_14] : memref<8x128xf32, #tpu.memory_space<vmem>>, vector<8x128xf32>
    %25 = arith.addf %24, %23 : vector<8x128xf32>
    %c0_15 = arith.constant 0 : index
    %c0_16 = arith.constant 0 : index
    %26 = vector.load %arg5[%c0_15, %c0_16] : memref<8x128xf32, #tpu.memory_space<vmem>>, vector<8x128xf32>
    tpu.vector_store %arg5[%c0_15, %c0_16], %25 {strides = array<i32>} : memref<8x128xf32, #tpu.memory_space<vmem>>, vector<8x128xf32>,
    %c0_i32_17 = arith.constant 0 : i32
    %27 = arith.cmpi eq, %arg1, %c0_i32_17 : i32
    %28 = arith.extui %27 : i1 to i32
    %c0_i32_18 = arith.constant 0 : i32
    %29 = arith.cmpi ne, %28, %c0_i32_18 : i32
    scf.if %29 {
      %c0_19 = arith.constant 0 : index
      %c0_20 = arith.constant 0 : index
      %30 = vector.load %arg5[%c0_19, %c0_20] : memref<8x128xf32, #tpu.memory_space<vmem>>, vector<8x128xf32>
      %c0_21 = arith.constant 0 : index
      %c0_22 = arith.constant 0 : index
      %31 = vector.load %arg4[%c0_21, %c0_22] : memref<8x128xf32, #tpu.memory_space<vmem>>, vector<8x128xf32>
      tpu.vector_store %arg4[%c0_21, %c0_22], %30 {strides = array<i32>} : memref<8x128xf32, #tpu.memory_space<vmem>>, vector<8x128xf32>,
    } else {
    }
    return
  }
  func.func @transform_0(%arg0: i32, %arg1: i32) -> (i32, i32) {
    %c0_i32 = arith.constant 0 : i32
    return %arg0, %arg1 : i32, i32
  }
  func.func @transform_1(%arg0: i32, %arg1: i32) -> (i32, i32) {
    %c0_i32 = arith.constant 0 : i32
    return %arg0, %arg1 : i32, i32
  }
  func.func @transform_2(%arg0: i32, %arg1: i32) -> (i32, i32) {
    %c0_i32 = arith.constant 0 : i32
    %c0_i32_0 = arith.constant 0 : i32
    return %arg0, %c0_i32 : i32, i32
  }
}

module attributes {stable_mosaic.version = 11 : i64} {
  func.func @_drae_split_kernel(%arg0: memref<4xf32, #tpu.memory_space<smem>>, %arg1: memref<8x128xf32, #tpu.memory_space<vmem>>, %arg2: memref<8x128xf32, #tpu.memory_space<vmem>>) attributes {dimension_semantics = [], scalar_prefetch = 0 : i64, scratch_operands = 0 : i64, tpu.core_type = #tpu.core_type<tc>} {
    %c0 = arith.constant 0 : index
    %0 = memref.load %arg0[%c0] : memref<4xf32, #tpu.memory_space<smem>>
    %c1 = arith.constant 1 : index
    %1 = memref.load %arg0[%c1] : memref<4xf32, #tpu.memory_space<smem>>
    %c2 = arith.constant 2 : index
    %2 = memref.load %arg0[%c2] : memref<4xf32, #tpu.memory_space<smem>>
    %c3 = arith.constant 3 : index
    %3 = memref.load %arg0[%c3] : memref<4xf32, #tpu.memory_space<smem>>
    %c0_0 = arith.constant 0 : index
    %c0_1 = arith.constant 0 : index
    %4 = vector.load %arg1[%c0_0, %c0_1] : memref<8x128xf32, #tpu.memory_space<vmem>>, vector<8x128xf32>
    %5 = tpu.iota {dimensions = array<i32: 0>} : vector<128x128xi32>
    %6 = tpu.iota {dimensions = array<i32: 1>} : vector<128x128xi32>
    %7 = arith.cmpi sle, %5, %6 : vector<128x128xi32>
    %8 = arith.extui %7 : vector<128x128xi1> to vector<128x128xi32>
    %9 = arith.sitofp %8 : vector<128x128xi32> to vector<128x128xf32>
    %cst = arith.constant 1.000000e+00 : f32
    %10 = vector.broadcast %cst : f32 to vector<128x128xf32>
    %11 = tpu.iota {dimensions = array<i32: 0>} : vector<8x8xi32>
    %12 = tpu.iota {dimensions = array<i32: 1>} : vector<8x8xi32>
    %13 = arith.cmpi slt, %12, %11 : vector<8x8xi32>
    %14 = arith.extui %13 : vector<8x8xi1> to vector<8x8xi32>
    %15 = arith.sitofp %14 : vector<8x8xi32> to vector<8x8xf32>
    %cst_2 = arith.constant dense<0.000000e+00> : vector<8x128xf32>
    %16 = tpu.matmul %4, %9, %cst_2 {dimension_numbers = #tpu.dot_dimension_numbers<[1], [0], [0], [1], [0, 0, 1, 1], [], []>} : vector<8x128xf32>, vector<128x128xf32>, vector<8x128xf32> -> vector<8x128xf32>
    %cst_3 = arith.constant dense<0.000000e+00> : vector<8x128xf32>
    %17 = tpu.matmul %4, %10, %cst_3 {dimension_numbers = #tpu.dot_dimension_numbers<[1], [0], [0], [1], [0, 0, 1, 1], [], []>} : vector<8x128xf32>, vector<128x128xf32>, vector<8x128xf32> -> vector<8x128xf32>
    %cst_4 = arith.constant dense<0.000000e+00> : vector<8x128xf32>
    %18 = tpu.matmul %15, %17, %cst_4 {dimension_numbers = #tpu.dot_dimension_numbers<[1], [0], [0], [1], [0, 0, 1, 1], [], []>} : vector<8x8xf32>, vector<8x128xf32>, vector<8x128xf32> -> vector<8x128xf32>
    %19 = arith.addf %16, %18 : vector<8x128xf32>
    %20 = tpu.iota {dimensions = array<i32: 0>} : vector<8x128xi32>
    %c128_i32 = arith.constant 128 : i32
    %21 = vector.broadcast %c128_i32 : i32 to vector<8x128xi32>
    %22 = arith.muli %20, %21 : vector<8x128xi32>
    %23 = tpu.iota {dimensions = array<i32: 1>} : vector<8x128xi32>
    %24 = arith.addi %22, %23 : vector<8x128xi32>
    %c3_i32 = arith.constant 3 : i32
    %25 = vector.broadcast %c3_i32 : i32 to vector<8x128xi32>
    %26 = arith.cmpi slt, %24, %25 : vector<8x128xi32>
    %c1_i32 = arith.constant 1 : i32
    %27 = vector.broadcast %c1_i32 : i32 to vector<8x128xi32>
    %28 = arith.addi %24, %27 : vector<8x128xi32>
    %29 = arith.sitofp %28 : vector<8x128xi32> to vector<8x128xf32>
    %30 = arith.divf %19, %29 : vector<8x128xf32>
    %31 = vector.broadcast %2 : f32 to vector<8x128xf32>
    %32 = arith.subf %31, %19 : vector<8x128xf32>
    %cst_5 = arith.constant 4.000000e+00 : f32
    %33 = vector.broadcast %cst_5 : f32 to vector<8x128xf32>
    %34 = arith.subf %33, %29 : vector<8x128xf32>
    %35 = arith.divf %32, %34 : vector<8x128xf32>
    %36 = arith.mulf %29, %30 : vector<8x128xf32>
    %37 = arith.mulf %36, %30 : vector<8x128xf32>
    %38 = vector.broadcast %3 : f32 to vector<8x128xf32>
    %39 = arith.subf %38, %37 : vector<8x128xf32>
    %cst_6 = arith.constant 4.000000e+00 : f32
    %40 = vector.broadcast %cst_6 : f32 to vector<8x128xf32>
    %41 = arith.subf %40, %29 : vector<8x128xf32>
    %42 = arith.mulf %41, %35 : vector<8x128xf32>
    %43 = arith.mulf %42, %35 : vector<8x128xf32>
    %44 = arith.subf %39, %43 : vector<8x128xf32>
    %45 = vector.broadcast %3 : f32 to vector<8x128xf32>
    %46 = arith.divf %44, %45 : vector<8x128xf32>
    %47 = arith.cmpf oeq, %46, %46 : vector<8x128xf32>
    %48 = arith.andi %26, %47 : vector<8x128xi1>
    %cst_7 = arith.constant 0x7F800000 : f32
    %49 = vector.broadcast %cst_7 : f32 to vector<8x128xf32>
    %50 = arith.select %48, %46, %49 : vector<8x128xi1>, vector<8x128xf32>
    %51 = vector.shape_cast %50 : vector<8x128xf32> to vector<1x8x128xf32>
    %cst_8 = arith.constant dense<0x7F800000> : vector<1xf32>
    %52 = vector.multi_reduction <minimumf>, %51, %cst_8 [1, 2] : vector<1x8x128xf32> to vector<1xf32>
    %53 = vector.shape_cast %52 : vector<1xf32> to vector<1x1x1xf32>
    %54 = vector.extract %53[0, 0, 0] : f32 from vector<1x1x1xf32>
    %55 = vector.broadcast %54 : f32 to vector<8x128xf32>
    %56 = arith.cmpf oeq, %50, %55 : vector<8x128xf32>
    %57 = arith.andi %56, %26 : vector<8x128xi1>
    %c2147483647_i32 = arith.constant 2147483647 : i32
    %58 = vector.broadcast %c2147483647_i32 : i32 to vector<8x128xi32>
    %59 = arith.select %57, %24, %58 : vector<8x128xi1>, vector<8x128xi32>
    %60 = vector.shape_cast %59 : vector<8x128xi32> to vector<1x8x128xi32>
    %cst_9 = arith.constant dense<2147483647> : vector<1xi32>
    %61 = vector.multi_reduction <minsi>, %60, %cst_9 [1, 2] : vector<1x8x128xi32> to vector<1xi32>
    %62 = vector.shape_cast %61 : vector<1xi32> to vector<1x1x1xi32>
    %63 = vector.extract %62[0, 0, 0] : i32 from vector<1x1x1xi32>
    %64 = vector.broadcast %63 : i32 to vector<8x128xi32>
    %65 = arith.cmpi eq, %24, %64 : vector<8x128xi32>
    %cst_10 = arith.constant 0.000000e+00 : f32
    %66 = vector.broadcast %cst_10 : f32 to vector<8x128xf32>
    %67 = arith.select %65, %30, %66 : vector<8x128xi1>, vector<8x128xf32>
    %68 = vector.shape_cast %67 : vector<8x128xf32> to vector<1x8x128xf32>
    %cst_11 = arith.constant dense<0.000000e+00> : vector<1xf32>
    %69 = vector.multi_reduction <add>, %68, %cst_11 [1, 2] : vector<1x8x128xf32> to vector<1xf32>
    %70 = vector.shape_cast %69 : vector<1xf32> to vector<1x1x1xf32>
    %71 = vector.extract %70[0, 0, 0] : f32 from vector<1x1x1xf32>
    %cst_12 = arith.constant 1.000000e+10 : f32
    %72 = arith.cmpf olt, %54, %cst_12 : f32
    %73 = arith.addf %71, %1 : f32
    %74 = arith.mulf %0, %54 : f32
    %75 = arith.addf %73, %74 : f32
    %76 = arith.select %72, %75, %1 : f32
    %cst_13 = arith.constant 0.000000e+00 : f32
    %77 = vector.broadcast %cst_13 : f32 to vector<8x128xf32>
    %78 = vector.broadcast %76 : f32 to vector<8x128xf32>
    %79 = arith.addf %77, %78 : vector<8x128xf32>
    %c0_14 = arith.constant 0 : index
    %c0_15 = arith.constant 0 : index
    %80 = vector.load %arg2[%c0_14, %c0_15] : memref<8x128xf32, #tpu.memory_space<vmem>>, vector<8x128xf32>
    tpu.vector_store %arg2[%c0_14, %c0_15], %79 {strides = array<i32>} : memref<8x128xf32, #tpu.memory_space<vmem>>, vector<8x128xf32>,
    return
  }
}

</mosaic_0001>

<llo_original>
// kernel: drae_loss.2
$region0: #{drae_loss.2}
  #allocation0 [shape = 'u32[]', space=smem, size = 0x4, offset = 0x4, fixed_abs, tag = 'smem constant byte address 0x4 - core index']
  #allocation1 [shape = 'u32[144,128]{1,0:T(1,128)}', space=vmem, size = 0x12000, scoped, tag = 'internal scratch']
  #allocation2 [shape = 'f32[8,128]{1,0:T(8,128)}', space=vmem, size = 0x1000, scoped, tag = 'scratch operand']
  %s0 = inlined_call_operand.vmem [shape: f32[8,512], index: 0, kind: input, shape index: {}]
  %s1 = inlined_call_operand.vmem [shape: f32[8,512], index: 1, kind: input, shape index: {}]
  %s2 = inlined_call_operand.vmem [shape: f32[8,128], index: 2, kind: output, shape index: {}]
  %s3 = sld [smem:[#allocation0]]
  $region26: #{drae_loss.2} parent=0
    _
  %s5 = ssub.s32 1, %s3
  %s6 = scalar_select 0, %s5, %s3
  // Predicated region
  $region2: #{drae_loss.2} parent=0 // pred_check
    _
  $region3: #{drae_loss.2} parent=0 // pred_check_branch
    %8 = sbr.rel (0) target = $region5
  $region4: #{drae_loss.2} parent=0 // pred_region
    _
  $region5: #{drae_loss.2} parent=0 // pred_fallthru
    _
  // Predicated region
  $region6: #{drae_loss.2} parent=0 // pred_check
    _
  $region7: #{drae_loss.2} parent=0 // pred_check_branch
    %10 = sbr.rel (0) target = $region9
  $region8: #{drae_loss.2} parent=0 // pred_region
    _
  $region9: #{drae_loss.2} parent=0 // pred_fallthru
    _
  %p11 = scmp.eq.s32.totalorder 0, 0
  // Predicated region
  $region10: #{drae_loss.2} parent=0 // pred_check
    %p12 = pneg %p11
  $region11: #{drae_loss.2} parent=0 // pred_check_branch
    %14 = sbr.rel (%p12) target = $region13
  $region12: #{drae_loss.2} parent=0 // pred_region
    %15 = vst [vmem:[#allocation2] sm:$0xff] 0.0
  $region13: #{drae_loss.2} parent=0 // pred_fallthru
    _
  %v16 = vld [vmem:[%s0] sm:$0xff]
  %v17 = vld [vmem:[%s1] sm:$0xff]
  %v18 = vsub.f32 %v16, %v17
  %v19 = vmul.f32 %v18, %v18
  %v20 = vadd.f32 %v19, 0.0
  %v21 = vld [vmem:[%s0 + $0x8] sm:$0xff]
  %v22 = vld [vmem:[%s1 + $0x8] sm:$0xff]
  %v23 = vsub.f32 %v21, %v22
  %v24 = vmul.f32 %v23, %v23
  %v25 = vadd.f32 %v20, %v24
  %v26 = vld [vmem:[%s0 + $0x10] sm:$0xff]
  %v27 = vld [vmem:[%s1 + $0x10] sm:$0xff]
  %v28 = vsub.f32 %v26, %v27
  %v29 = vmul.f32 %v28, %v28
  %v30 = vadd.f32 %v25, %v29
  %v31 = vld [vmem:[%s0 + $0x18] sm:$0xff]
  %v32 = vld [vmem:[%s1 + $0x18] sm:$0xff]
  %v33 = vsub.f32 %v31, %v32
  %v34 = vmul.f32 %v33, %v33
  %v35 = vadd.f32 %v30, %v34
  %v36 = vld [vmem:[#allocation2] sm:$0xff]
  %v37 = vadd.f32 %v36, %v35
  %38 = vst [vmem:[#allocation2] sm:$0xff] %v37
  // Predicated region
  $region14: #{drae_loss.2} parent=0 // pred_check
    %p39 = pneg %p11
  $region15: #{drae_loss.2} parent=0 // pred_check_branch
    %41 = sbr.rel (%p39) target = $region17
  $region16: #{drae_loss.2} parent=0 // pred_region
    %v42 = vld [vmem:[#allocation2] sm:$0xff]
    %43 = vst [vmem:[%s2] sm:$0xff] %v42
  $region17: #{drae_loss.2} parent=0 // pred_fallthru
    _
  // Predicated region
  $region18: #{drae_loss.2} parent=0 // pred_check
    _
  $region19: #{drae_loss.2} parent=0 // pred_check_branch
    %45 = sbr.rel (0) target = $region21
  $region20: #{drae_loss.2} parent=0 // pred_region
    _
  $region21: #{drae_loss.2} parent=0 // pred_fallthru
    _
  // Predicated region
  $region22: #{drae_loss.2} parent=0 // pred_check
    _
  $region23: #{drae_loss.2} parent=0 // pred_check_branch
    %47 = sbr.rel (0) target = $region25
  $region24: #{drae_loss.2} parent=0 // pred_region
    _
  $region25: #{drae_loss.2} parent=0 // pred_fallthru
    _

// kernel: drae_loss.3
$region0: #{drae_loss.3}
  #allocation0 [shape = 'u32[]', space=smem, size = 0x4, offset = 0x4, fixed_abs, tag = 'smem constant byte address 0x4 - core index']
  #allocation1 [shape = 'u32[144,128]{1,0:T(1,128)}', space=vmem, size = 0x12000, scoped, tag = 'internal scratch']
  %s0 = inlined_call_operand.vmem [shape: f32[4], index: 0, kind: input, shape index: {}]
  %s1 = inlined_call_operand.vmem [shape: f32[8,128], index: 1, kind: input, shape index: {}]
  %s2 = inlined_call_operand.vmem [shape: f32[8,128], index: 2, kind: output, shape index: {}]
  %s3 = sld [smem:[#allocation0]]
  $region22: #{drae_loss.3} parent=0
    _
  %s5 = ssub.s32 1, %s3
  %s6 = scalar_select 0, %s5, %s3
  $region1: #{drae_loss.3} parent=0
    #allocation2 [shape = 'u8[512]{0}', space=smem, size = 0x200, scoped, tag = 'input window, operand 0, single buffered']
    #allocation3 [shape = 's32[1]{0}', space=sflag, size = 0x4, scoped, tag = 'scoped memory for drae_loss.3']
    %7 = vsyncpa [#allocation3], 0
    // Predicated region
    $region2: #{drae_loss.3} parent=1 // pred_check
      _
    $region3: #{drae_loss.3} parent=1 // pred_check_branch
      %9 = sbr.rel (0) target = $region5
    $region4: #{drae_loss.3} parent=1 // pred_region
      %s11 = ssub.s32 16, 16
      %12 = vsyncadd [#allocation3], %s11
      %s14 = sshll.u32 %s0, 4
      %s15 = int_to_ptr.vmem [resolvable:$true] %s14
      %17 = dma.vmem_to_smem %s15, 16, [#allocation2], [#allocation3]
    $region5: #{drae_loss.3} parent=1 // pred_fallthru
      _
    // Predicated region
    $region6: #{drae_loss.3} parent=1 // pred_check
      _
    $region7: #{drae_loss.3} parent=1 // pred_check_branch
      %19 = sbr.rel (0) target = $region9
    $region8: #{drae_loss.3} parent=1 // pred_region
      _
    $region9: #{drae_loss.3} parent=1 // pred_fallthru
      _
    // Predicated region
    $region10: #{drae_loss.3} parent=1 // pred_check
      _
    $region11: #{drae_loss.3} parent=1 // pred_check_branch
      %21 = sbr.rel (0) target = $region13
    $region12: #{drae_loss.3} parent=1 // pred_region
      %22 = dma.done [#allocation3], 16
    $region13: #{drae_loss.3} parent=1 // pred_fallthru
      _
    %23 = sfence
    %s24 = sld [smem:[#allocation2]]
    %s25 = sld [smem:[#allocation2 + $0x1]]
    %s26 = sld [smem:[#allocation2 + $0x2]]
    %s27 = sld [smem:[#allocation2 + $0x3]]
    %v28 = vld [vmem:[%s1] sm:$0xff]
    %v29 = vlaneseq
    %v30 = vshrl.u32 %v29, 7
    %v31 = vadd.s32 %v30, 8
    %v32 = vadd.s32 %v30, 16
    %v33 = vadd.s32 %v30, 24
    %v34 = vadd.s32 %v30, 32
    %v35 = vadd.s32 %v30, 40
    %v36 = vadd.s32 %v30, 48
    %v37 = vadd.s32 %v30, 56
    %v38 = vadd.s32 %v30, 64
    %v39 = vadd.s32 %v30, 72
    %v40 = vadd.s32 %v30, 80
    %v41 = vadd.s32 %v30, 88
    %v42 = vadd.s32 %v30, 96
    %v43 = vadd.s32 %v30, 104
    %v44 = vadd.s32 %v30, 112
    %v45 = vadd.s32 %v30, 120
    %v46 = vlaneseq
    %v47 = vand.u32 %v46, 127
    %vm48 = vcmp.le.s32.totalorder %v30, %v47
    %vm49 = vcmp.le.s32.totalorder %v31, %v47
    %vm50 = vcmp.le.s32.totalorder %v32, %v47
    %vm51 = vcmp.le.s32.totalorder %v33, %v47
    %vm52 = vcmp.le.s32.totalorder %v34, %v47
    %vm53 = vcmp.le.s32.totalorder %v35, %v47
    %vm54 = vcmp.le.s32.totalorder %v36, %v47
    %vm55 = vcmp.le.s32.totalorder %v37, %v47
    %vm56 = vcmp.le.s32.totalorder %v38, %v47
    %vm57 = vcmp.le.s32.totalorder %v39, %v47
    %vm58 = vcmp.le.s32.totalorder %v40, %v47
    %vm59 = vcmp.le.s32.totalorder %v41, %v47
    %vm60 = vcmp.le.s32.totalorder %v42, %v47
    %vm61 = vcmp.le.s32.totalorder %v43, %v47
    %vm62 = vcmp.le.s32.totalorder %v44, %v47
    %vm63 = vcmp.le.s32.totalorder %v45, %v47
    %v64 = vsel %vm48, 1, 0
    %v65 = vsel %vm49, 1, 0
    %v66 = vsel %vm50, 1, 0
    %v67 = vsel %vm51, 1, 0
    %v68 = vsel %vm52, 1, 0
    %v69 = vsel %vm53, 1, 0
    %v70 = vsel %vm54, 1, 0
    %v71 = vsel %vm55, 1, 0
    %v72 = vsel %vm56, 1, 0
    %v73 = vsel %vm57, 1, 0
    %v74 = vsel %vm58, 1, 0
    %v75 = vsel %vm59, 1, 0
    %v76 = vsel %vm60, 1, 0
    %v77 = vsel %vm61, 1, 0
    %v78 = vsel %vm62, 1, 0
    %v79 = vsel %vm63, 1, 0
    %v80 = vcvt.s32.f32 %v64
    %v81 = vcvt.s32.f32 %v65
    %v82 = vcvt.s32.f32 %v66
    %v83 = vcvt.s32.f32 %v67
    %v84 = vcvt.s32.f32 %v68
    %v85 = vcvt.s32.f32 %v69
    %v86 = vcvt.s32.f32 %v70
    %v87 = vcvt.s32.f32 %v71
    %v88 = vcvt.s32.f32 %v72
    %v89 = vcvt.s32.f32 %v73
    %v90 = vcvt.s32.f32 %v74
    %v91 = vcvt.s32.f32 %v75
    %v92 = vcvt.s32.f32 %v76
    %v93 = vcvt.s32.f32 %v77
    %v94 = vcvt.s32.f32 %v78
    %v95 = vcvt.s32.f32 %v79
    %vm96 = vcmp.lt.s32.totalorder %v47, %v30
    %v97 = vsel %vm96, 1, 0
    %v98 = vcvt.s32.f32 %v97
    %99 = vmatprep.subr.mxu0 0.0
    %100 = vmatpush1.msra.mxu0 1.0
    %101 = vmatprep.subr.mxu0 0.0
    %102 = vmatpush1.msra.mxu0 1.0
    %103 = vmatprep.subr.mxu0 0.0
    %104 = vmatpush1.msra.mxu0 1.0
    %105 = vmatprep.subr.mxu0 0.0
    %106 = vmatpush1.msra.mxu0 1.0
    %107 = vmatprep.subr.mxu0 0.0
    %108 = vmatpush1.msra.mxu0 1.0
    %109 = vmatprep.subr.mxu0 0.0
    %110 = vmatpush1.msra.mxu0 1.0
    %111 = vmatprep.subr.mxu0 0.0
    %112 = vmatpush1.msra.mxu0 1.0
    %113 = vmatprep.subr.mxu0 0.0
    %114 = vmatpush1.msra.mxu0 1.0
    %115 = vmatprep.subr.mxu0 0.0
    %116 = vmatpush1.msra.mxu0 1.0
    %117 = vmatprep.subr.mxu0 0.0
    %118 = vmatpush1.msra.mxu0 1.0
    %119 = vmatprep.subr.mxu0 0.0
    %120 = vmatpush1.msra.mxu0 1.0
    %121 = vmatprep.subr.mxu0 0.0
    %122 = vmatpush1.msra.mxu0 1.0
    %123 = vmatprep.subr.mxu0 0.0
    %124 = vmatpush1.msra.mxu0 1.0
    %125 = vmatprep.subr.mxu0 0.0
    %126 = vmatpush1.msra.mxu0 1.0
    %127 = vmatprep.subr.mxu0 0.0
    %128 = vmatpush1.msra.mxu0 1.0
    %129 = vmatprep.subr.mxu0 0.0
    %130 = vmatpush1.msra.mxu0 1.0
    %131 = vmatprep.subr.mxu0 0.0
    %132 = vmatpush1.msra.mxu0 0.0
    %133 = vmatprep.subr.mxu0 0.0
    %134 = vmatpush1.msra.mxu0 0.0
    %135 = vmatprep.subr.mxu0 0.0
    %136 = vmatpush1.msra.mxu0 0.0
    %137 = vmatprep.subr.mxu0 0.0
    %138 = vmatpush1.msra.mxu0 0.0
    %139 = vmatprep.subr.mxu0 0.0
    %140 = vmatpush1.msra.mxu0 0.0
    %141 = vmatprep.subr.mxu0 0.0
    %142 = vmatpush1.msra.mxu0 0.0
    %143 = vmatprep.subr.mxu0 0.0
    %144 = vmatpush1.msra.mxu0 0.0
    %145 = vmatprep.subr.mxu0 0.0
    %146 = vmatpush1.msra.mxu0 0.0
    %147 = vmatprep.subr.mxu0 0.0
    %148 = vmatpush1.msra.mxu0 0.0
    %149 = vmatprep.subr.mxu0 0.0
    %150 = vmatpush1.msra.mxu0 0.0
    %151 = vmatprep.subr.mxu0 0.0
    %152 = vmatpush1.msra.mxu0 0.0
    %153 = vmatprep.subr.mxu0 0.0
    %154 = vmatpush1.msra.mxu0 0.0
    %155 = vmatprep.subr.mxu0 0.0
    %156 = vmatpush1.msra.mxu0 0.0
    %157 = vmatprep.subr.mxu0 0.0
    %158 = vmatpush1.msra.mxu0 0.0
    %159 = vmatprep.subr.mxu0 0.0
    %160 = vmatpush1.msra.mxu0 0.0
    %161 = vmatprep.subr.mxu0 0.0
    %162 = vmatpush1.msra.mxu0 0.0
    %163 = vmatprep.mubr.f32.mxu0 0.0
    %164 = vmatmul.mubr.f32.gmra.mrb[0].mxu0 %v28
    %v165 = vpop.f32.mrb[0].mxu0
    %v166 = vadd.f32 0.0, %v165
    %v167 = vpop.f32.mrb[0].mxu0
    %168 = vdwg.mxu0
    %vm169 = vcmask 64512
    %v171 = vsel %vm169, %v98, 0
    %173 = vmatprep.subr.mxu0 0.0
    %174 = vmatpush1.msra.mxu0 %v166
    %175 = vmatprep.subr.mxu0 0.0
    %176 = vmatpush1.msra.mxu0 0.0
    %177 = vmatprep.subr.mxu0 0.0
    %178 = vmatpush1.msra.mxu0 0.0
    %179 = vmatprep.subr.mxu0 0.0
    %180 = vmatpush1.msra.mxu0 0.0
    %181 = vmatprep.subr.mxu0 0.0
    %182 = vmatpush1.msra.mxu0 0.0
    %183 = vmatprep.subr.mxu0 0.0
    %184 = vmatpush1.msra.mxu0 0.0
    %185 = vmatprep.subr.mxu0 0.0
    %186 = vmatpush1.msra.mxu0 0.0
    %187 = vmatprep.subr.mxu0 0.0
    %188 = vmatpush1.msra.mxu0 0.0
    %189 = vmatprep.subr.mxu0 0.0
    %190 = vmatpush1.msra.mxu0 0.0
    %191 = vmatprep.subr.mxu0 0.0
    %192 = vmatpush1.msra.mxu0 0.0
    %193 = vmatprep.subr.mxu0 0.0
    %194 = vmatpush1.msra.mxu0 0.0
    %195 = vmatprep.subr.mxu0 0.0
    %196 = vmatpush1.msra.mxu0 0.0
    %197 = vmatprep.subr.mxu0 0.0
    %198 = vmatpush1.msra.mxu0 0.0
    %199 = vmatprep.subr.mxu0 0.0
    %200 = vmatpush1.msra.mxu0 0.0
    %201 = vmatprep.subr.mxu0 0.0
    %202 = vmatpush1.msra.mxu0 0.0
    %203 = vmatprep.subr.mxu0 0.0
    %204 = vmatpush1.msra.mxu0 0.0
    %205 = vmatprep.subr.mxu0 0.0
    %206 = vmatpush1.msra.mxu0 0.0
    %207 = vmatprep.subr.mxu0 0.0
    %208 = vmatpush1.msra.mxu0 0.0
    %209 = vmatprep.subr.mxu0 0.0
    %210 = vmatpush1.msra.mxu0 0.0
    %211 = vmatprep.subr.mxu0 0.0
    %212 = vmatpush1.msra.mxu0 0.0
    %213 = vmatprep.subr.mxu0 0.0
    %214 = vmatpush1.msra.mxu0 0.0
    %215 = vmatprep.subr.mxu0 0.0
    %216 = vmatpush1.msra.mxu0 0.0
    %217 = vmatprep.subr.mxu0 0.0
    %218 = vmatpush1.msra.mxu0 0.0
    %219 = vmatprep.subr.mxu0 0.0
    %220 = vmatpush1.msra.mxu0 0.0
    %221 = vmatprep.subr.mxu0 0.0
    %222 = vmatpush1.msra.mxu0 0.0
    %223 = vmatprep.subr.mxu0 0.0
    %224 = vmatpush1.msra.mxu0 0.0
    %225 = vmatprep.subr.mxu0 0.0
    %226 = vmatpush1.msra.mxu0 0.0
    %227 = vmatprep.subr.mxu0 0.0
    %228 = vmatpush1.msra.mxu0 0.0
    %229 = vmatprep.subr.mxu0 0.0
    %230 = vmatpush1.msra.mxu0 0.0
    %231 = vmatprep.subr.mxu0 0.0
    %232 = vmatpush1.msra.mxu0 0.0
    %233 = vmatprep.subr.mxu0 0.0
    %234 = vmatpush1.msra.mxu0 0.0
    %235 = vmatprep.subr.mxu0 0.0
    %236 = vmatpush1.msra.mxu0 0.0
    %237 = vmatprep.mubr.f32.mxu0 0.0
    %238 = vmatmul.mubr.f32.gmra.mrb[0].mxu0 %v171
    %v239 = vpop.f32.mrb[0].mxu0
    %v240 = vadd.f32 0.0, %v239
    %v241 = vpop.f32.mrb[0].mxu0
    %242 = vdwg.mxu0
    %243 = vmatprep.subr.mxu0 0.0
    %244 = vmatpush1.msra.mxu0 %v80
    %245 = vmatprep.subr.mxu0 0.0
    %246 = vmatpush1.msra.mxu0 %v81
    %247 = vmatprep.subr.mxu0 0.0
    %248 = vmatpush1.msra.mxu0 %v82
    %249 = vmatprep.subr.mxu0 0.0
    %250 = vmatpush1.msra.mxu0 %v83
    %251 = vmatprep.subr.mxu0 0.0
    %252 = vmatpush1.msra.mxu0 %v84
    %253 = vmatprep.subr.mxu0 0.0
    %254 = vmatpush1.msra.mxu0 %v85
    %255 = vmatprep.subr.mxu0 0.0
    %256 = vmatpush1.msra.mxu0 %v86
    %257 = vmatprep.subr.mxu0 0.0
    %258 = vmatpush1.msra.mxu0 %v87
    %259 = vmatprep.subr.mxu0 0.0
    %260 = vmatpush1.msra.mxu0 %v88
    %261 = vmatprep.subr.mxu0 0.0
    %262 = vmatpush1.msra.mxu0 %v89
    %263 = vmatprep.subr.mxu0 0.0
    %264 = vmatpush1.msra.mxu0 %v90
    %265 = vmatprep.subr.mxu0 0.0
    %266 = vmatpush1.msra.mxu0 %v91
    %267 = vmatprep.subr.mxu0 0.0
    %268 = vmatpush1.msra.mxu0 %v92
    %269 = vmatprep.subr.mxu0 0.0
    %270 = vmatpush1.msra.mxu0 %v93
    %271 = vmatprep.subr.mxu0 0.0
    %272 = vmatpush1.msra.mxu0 %v94
    %273 = vmatprep.subr.mxu0 0.0
    %274 = vmatpush1.msra.mxu0 %v95
    %275 = vmatprep.subr.mxu0 0.0
    %276 = vmatpush1.msra.mxu0 0.0
    %277 = vmatprep.subr.mxu0 0.0
    %278 = vmatpush1.msra.mxu0 0.0
    %279 = vmatprep.subr.mxu0 0.0
    %280 = vmatpush1.msra.mxu0 0.0
    %281 = vmatprep.subr.mxu0 0.0
    %282 = vmatpush1.msra.mxu0 0.0
    %283 = vmatprep.subr.mxu0 0.0
    %284 = vmatpush1.msra.mxu0 0.0
    %285 = vmatprep.subr.mxu0 0.0
    %286 = vmatpush1.msra.mxu0 0.0
    %287 = vmatprep.subr.mxu0 0.0
    %288 = vmatpush1.msra.mxu0 0.0
    %289 = vmatprep.subr.mxu0 0.0
    %290 = vmatpush1.msra.mxu0 0.0
    %291 = vmatprep.subr.mxu0 0.0
    %292 = vmatpush1.msra.mxu0 0.0
    %293 = vmatprep.subr.mxu0 0.0
    %294 = vmatpush1.msra.mxu0 0.0
    %295 = vmatprep.subr.mxu0 0.0
    %296 = vmatpush1.msra.mxu0 0.0
    %297 = vmatprep.subr.mxu0 0.0
    %298 = vmatpush1.msra.mxu0 0.0
    %299 = vmatprep.subr.mxu0 0.0
    %300 = vmatpush1.msra.mxu0 0.0
    %301 = vmatprep.subr.mxu0 0.0
    %302 = vmatpush1.msra.mxu0 0.0
    %303 = vmatprep.subr.mxu0 0.0
    %304 = vmatpush1.msra.mxu0 0.0
    %305 = vmatprep.subr.mxu0 0.0
    %306 = vmatpush1.msra.mxu0 0.0
    %307 = vmatprep.mubr.f32.mxu0 0.0
    %308 = vmatmul.mubr.f32.gmra.mrb[0].mxu0 %v28
    %v309 = vpop.f32.mrb[0].mxu0
    %v310 = vadd.f32 %v240, %v309
    %v311 = vpop.f32.mrb[0].mxu0
    %312 = vdwg.mxu0
    %v313 = vmul.u32 %v30, 128
    %v314 = vadd.s32 %v313, %v47
    %vm315 = vcmp.lt.s32.totalorder %v314, 3
    %v316 = vadd.s32 %v314, 1
    %v317 = vcvt.s32.f32 %v316
    %v318 = vrcp.pop %v317
    %v319 = vmul.f32 %v310, %v318
    %v320 = vstv %s26
    %v321 = vsub.f32 %v320, %v310
    %v322 = vsub.f32 4.0, %v317
    %v323 = vrcp.pop %v322
    %v324 = vmul.f32 %v321, %v323
    %v325 = vmul.f32 %v317, %v319
    %v326 = vmul.f32 %v325, %v319
    %v327 = vstv %s27
    %v328 = vsub.f32 %v327, %v326
    %v329 = vmul.f32 %v322, %v324
    %v330 = vmul.f32 %v329, %v324
    %v331 = vsub.f32 %v328, %v330
    %v332 = vrcp.pop %v327
    %v333 = vmul.f32 %v331, %v332
    %vm334 = vcmp.eq.f32.partialorder %v333, %v333
    %vm335 = vmand %vm315, %vm334
    %v336 = vsel %vm335, %v333, inf
    %337 = vmin.xlane.f32.xlu0 %v336
    %v338 = vpop.xlane.xlu0 %337
    %v339 = vrot.slane %v338, 4
    %v340 = vmin.f32 %v338, %v339
    %v341 = vrot.slane %v340, 2
    %v342 = vmin.f32 %v340, %v341
    %v343 = vrot.slane %v342, 1
    %v344 = vmin.f32 %v342, %v343
    %s345 = vtos %v344
    %v346 = vstv %s345
    %vm347 = vcmp.eq.f32.partialorder %v336, %v346
    %vm348 = vmand %vm347, %vm315
    %v349 = vsel %vm348, %v314, 2147483647
    %v350 = vand.u32 %v349, 65535
    %v351 = vshra.s32 %v349, 16
    %v352 = vcvt.s32.f32 %v350
    %v353 = vcvt.s32.f32 %v351
    %354 = vmin.xlane.f32.xlu0 %v353
    %v355 = vpop.xlane.xlu0 %354
    %vm356 = vcmp.eq.f32.partialorder %v353, %v355
    %v357 = vsel %vm356, %v352, inf
    %358 = vmin.xlane.f32.xlu0 %v357
    %v359 = vpop.xlane.xlu0 %358
    %v360 = vcvt.f32.s32 %v359
    %v361 = vcvt.f32.s32 %v355
    %v362 = vshll.u32 %v361, 16
    %v363 = vadd.s32 %v362, %v360
    %v364 = vrot.slane %v363, 4
    %vm365 = vcmp.lt.s32.totalorder %v363, %v364
    %v366 = vsel %vm365, %v363, %v364
    %v367 = vrot.slane %v366, 2
    %vm368 = vcmp.lt.s32.totalorder %v366, %v367
    %v369 = vsel %vm368, %v366, %v367
    %v370 = vrot.slane %v369, 1
    %vm371 = vcmp.lt.s32.totalorder %v369, %v370
    %v372 = vsel %vm371, %v369, %v370
    %s373 = vtos %v372
    %v374 = vstv %s373
    %vm375 = vcmp.eq.s32.totalorder %v314, %v374
    %v376 = vsel %vm375, %v319, 0.0
    %377 = vadd.xlane.f32.xlu0 %v376
    %v378 = vpop.xlane.xlu0 %377
    %v379 = vrot.slane %v378, 4
    %v380 = vadd.f32 %v378, %v379
    %v381 = vrot.slane %v380, 2
    %v382 = vadd.f32 %v380, %v381
    %v383 = vrot.slane %v382, 1
    %v384 = vadd.f32 %v382, %v383
    %s385 = vtos %v384
    %p386 = scmp.lt.f32.partialorder %s345, 1e+10
    %s387 = sadd.f32 %s385, %s25
    %s388 = smul.f32 %s24, %s345
    %s389 = sadd.f32 %s387, %s388
    %s390 = scalar_select %p386, %s389, %s25
    %v391 = vstv %s390
    %v392 = vadd.f32 %v391, 0.0
    %393 = vst [vmem:[%s2] sm:$0xff] %v392
    // Predicated region
    $region14: #{drae_loss.3} parent=1 // pred_check
      _
    $region15: #{drae_loss.3} parent=1 // pred_check_branch
      %395 = sbr.rel (0) target = $region17
    $region16: #{drae_loss.3} parent=1 // pred_region
      _
    $region17: #{drae_loss.3} parent=1 // pred_fallthru
      _
    // Predicated region
    $region18: #{drae_loss.3} parent=1 // pred_check
      _
    $region19: #{drae_loss.3} parent=1 // pred_check_branch
      %397 = sbr.rel (0) target = $region21
    $region20: #{drae_loss.3} parent=1 // pred_region
      _
    $region21: #{drae_loss.3} parent=1 // pred_fallthru
      _
    %398 = vsyncpa [#allocation3], 1

</llo_original>
